<compile_context>
chip_gen: v6e
topology: v6e:2x2x1
jax: 0.10.0
libtpu: 0.0.40
codegen_flags: <defaults>
</compile_context>

<pallas_src>
import functools

import jax
import jax.numpy as jnp
from jax.experimental import pallas as pl
from jax.experimental.pallas import tpu as pltpu

KSIZE = 7
PAD = (KSIZE - 1) // 2
BN_EPS = 1e-5


# ---------------------------------------------------------------------------
# pltpu.roll orientation probe (cached): guards against silent direction
# flips across jax/Mosaic versions.
# ---------------------------------------------------------------------------
@functools.lru_cache(maxsize=None)
def _roll_sign() -> int:
    def _probe(x_ref, o_ref):
        o_ref[...] = pltpu.roll(x_ref[...], 1, 1)

    x = jnp.arange(8 * 128, dtype=jnp.float32).reshape(8, 128)
    y = pl.pallas_call(
        _probe, out_shape=jax.ShapeDtypeStruct((8, 128), jnp.float32))(x)
    return 1 if bool(y[0, 0] == x[0, 127]) else -1


def _lane_shift(x, src_offset, size, roll_sign):
    """y[..., p] = x[..., (p + src_offset) % size] via one XLU lane rotate."""
    shift = (-src_offset if roll_sign == 1 else src_offset) % size
    if shift == 0:
        return x
    return pltpu.roll(x, shift, x.ndim - 1)


# ---------------------------------------------------------------------------
# Shared finalize: factorized 7x7 conv + train-mode BN + ReLU + sigmoid.
# ---------------------------------------------------------------------------
def _conv_bn_relu_sigmoid(cp, w_ref, p_ref, *, batch, height, width,
                          roll_sign):
    """cp: (2B, HW) f32, rows [0..B) = channel-max plane, [B..2B) = mean plane.
    Returns the (B, HW) sigmoid attention map."""
    hw = height * width
    two_b = 2 * batch

    lane = jax.lax.broadcasted_iota(jnp.int32, (1, hw), 1)
    col = lane % width
    row = lane // width
    sub = jax.lax.broadcasted_iota(jnp.int32, (two_b, 1), 0)
    is_max_row = sub < batch

    conv_bias = p_ref[0]
    gamma = p_ref[1]
    beta = p_ref[2]

    # Step 1: 6 column rolls of the packed planes, per-dj column mask applied
    # once (dj = 0 needs neither).
    rolled = []
    for kw in range(KSIZE):
        dj = kw - PAD
        r = _lane_shift(cp, dj, hw, roll_sign)
        if dj > 0:
            r = jnp.where(col < width - dj, r, 0.0)
        elif dj < 0:
            r = jnp.where(col >= -dj, r, 0.0)
        rolled.append(r)

    # Steps 2+3: per-row weighted sums on the VPU, then 6 row rolls (shift =
    # di*width) with the per-di row mask applied once.
    acc = jnp.zeros((two_b, hw), jnp.float32)
    for kh in range(KSIZE):
        di = kh - PAD
        partial = jnp.zeros((two_b, hw), jnp.float32)
        for kw in range(KSIZE):
            w_max = w_ref[kh * KSIZE + kw]                    # max-plane tap
            w_mean = w_ref[KSIZE * KSIZE + kh * KSIZE + kw]   # mean-plane tap
            w_col = jnp.where(is_max_row, w_max, w_mean)      # (2B, 1)
            partial = partial + w_col * rolled[kw]
        shifted = _lane_shift(partial, di * width, hw, roll_sign)
        if di > 0:
            shifted = jnp.where(row < height - di, shifted, 0.0)
        elif di < 0:
            shifted = jnp.where(row >= -di, shifted, 0.0)
        acc = acc + shifted

    # Collapse the two planes: (2B, HW) -> (B, HW), add conv bias.
    conv = acc.reshape(2, batch, hw).sum(axis=0) + conv_bias

    # BatchNorm2d(1), training mode: stats over B*H*W, biased variance.
    mu = jnp.mean(conv, keepdims=True)
    var = jnp.mean(jnp.square(conv - mu), keepdims=True)
    y = (conv - mu) * (gamma * jax.lax.rsqrt(var + BN_EPS)) + beta
    z = jnp.maximum(y, 0.0)                   # ReLU
    return 1.0 / (1.0 + jnp.exp(-z))          # exact sigmoid


# ---------------------------------------------------------------------------
# Kernels.
# ---------------------------------------------------------------------------
def _fused_kernel(x_ref, w_ref, p_ref, o_ref, *, height, width, roll_sign):
    """Single-pass path: x resident in VMEM, one HBM read + one write."""
    batch, channels, _ = x_ref.shape
    xf = x_ref[...].astype(jnp.float32)                        # (B, C, HW)
    x_max = jnp.max(xf, axis=1)                                # (B, HW)
    x_mean = jnp.sum(xf, axis=1) * (1.0 / channels)            # (B, HW)
    cp = jnp.concatenate([x_max, x_mean], axis=0)              # (2B, HW)
    sig = _conv_bn_relu_sigmoid(cp, w_ref, p_ref, batch=batch,
                                height=height, width=width,
                                roll_sign=roll_sign)
    o_ref[...] = (xf * sig[:, None, :]).astype(o_ref.dtype)


def _compress_scale_kernel(x_ref, w_ref, p_ref, scale_ref, max_acc, sum_acc,
                           *, channels, c_tile, height, width, roll_sign,
                           ragged):
    """Pass 1 of the streaming path: channel-tiled max/sum reduction into
    resident f32 accumulators; conv/BN/ReLU/sigmoid on the last tile."""
    ct = pl.program_id(0)

    @pl.when(ct == 0)
    def _init():
        max_acc[...] = jnp.full(max_acc.shape, -jnp.inf, jnp.float32)
        sum_acc[...] = jnp.zeros(sum_acc.shape, jnp.float32)

    xf = x_ref[...].astype(jnp.float32)                        # (B, TC, HW)
    if ragged:
        # Last tile may extend past C: mask the padded channels.
        ch = jax.lax.broadcasted_iota(jnp.int32, (1, xf.shape[1], 1), 1)
        valid = ch < (channels - ct * c_tile)
        x_for_max = jnp.where(valid, xf, -jnp.inf)
        x_for_sum = jnp.where(valid, xf, 0.0)
    else:
        x_for_max = x_for_sum = xf
    max_acc[...] = jnp.maximum(max_acc[...], jnp.max(x_for_max, axis=1))
    sum_acc[...] = sum_acc[...] + jnp.sum(x_for_sum, axis=1)

    @pl.when(ct == pl.num_programs(0) - 1)
    def _finalize():
        batch = max_acc.shape[0]
        cp = jnp.concatenate(
            [max_acc[...], sum_acc[...] * (1.0 / channels)], axis=0)
        sig = _conv_bn_relu_sigmoid(cp, w_ref, p_ref, batch=batch,
                                    height=height, width=width,
                                    roll_sign=roll_sign)
        scale_ref[...] = sig[:, None, :]


def _apply_scale_kernel(x_ref, scale_ref, o_ref):
    """Pass 2: o = x * scale, streamed in the input dtype (megacore parallel)."""
    o_ref[...] = (x_ref[...].astype(jnp.float32)
                  * scale_ref[...]).astype(o_ref.dtype)


# ---------------------------------------------------------------------------
# Per-generation sizing.
# ---------------------------------------------------------------------------
@functools.lru_cache(maxsize=None)
def _hw_config():
    vmem = 64 * 2**20                         # conservative default
    try:
        info = pltpu.get_tpu_info()
        vmem = int(getattr(info, "vmem_capacity_bytes", vmem) or vmem)
    except Exception:
        pass
    vmem_limit = int(min(80 * 2**20, 0.65 * vmem))
    return dict(
        vmem_limit=vmem_limit,
        block_budget=int(min(8 * 2**20, vmem_limit // 6)),
        fuse_limit=int(vmem_limit * 0.75),
        # On small-VMEM / 2-TC parts (v7x) keep >=2 grid steps so the
        # megacore can shard the parallel writeback pass.
        prefer_multi_tile=vmem < 100 * 2**20,
    )


def _sublane_multiple(dtype):
    return max(8, 32 // jnp.dtype(dtype).itemsize)   # f32:8, bf16:16, int8:32


def _pick_c_tile(C, B, HW, dtype, block_budget, prefer_multi_tile):
    sub = _sublane_multiple(dtype)
    if C <= sub:
        return C
    itemsize = jnp.dtype(dtype).itemsize
    max_tile = (C // sub) * sub
    cands = [t for t in range(sub, max_tile + 1, sub)
             if B * t * HW * itemsize <= block_budget]
    if not cands:
        return sub
    if prefer_multi_tile:
        multi = [t for t in cands if pl.cdiv(C, t) >= 2]
        if multi:
            cands = multi
    divs = [t for t in cands if C % t == 0]
    return max(divs) if divs else max(cands)


# ---------------------------------------------------------------------------
# Wrapper.
# ---------------------------------------------------------------------------
@functools.partial(
    jax.jit, static_argnames=("c_tile", "fused", "roll_sign", "vmem_limit"))
def _spatial_attention_impl(x, conv_w, conv_b, bn_gamma, bn_beta, *,
                            c_tile, fused, roll_sign, vmem_limit):
    B, C, H, W = x.shape
    HW = H * W

    # TODO(synk): pad HW to a multiple of 128 (crop at the end) for lane-dense
    # stores when production feature maps are e.g. 14x14 / 7x7.
    x_flat = x.reshape(B, C, HW)                               # native dtype
    w_flat = conv_w.astype(jnp.float32).reshape(-1)            # (2*49,) SMEM
    params = jnp.stack([
        jnp.asarray(conv_b, jnp.float32).reshape(()),
        jnp.asarray(bn_gamma, jnp.float32).reshape(()),
        jnp.asarray(bn_beta, jnp.float32).reshape(()),
    ])

    smem = pl.BlockSpec(memory_space=pltpu.MemorySpace.SMEM)

    if fused:
        out_flat = pl.pallas_call(
            functools.partial(_fused_kernel, height=H, width=W,
                              roll_sign=roll_sign),
            out_shape=jax.ShapeDtypeStruct((B, C, HW), x.dtype),
            in_specs=[pl.BlockSpec(memory_space=pltpu.MemorySpace.VMEM),
                      smem, smem],
            out_specs=pl.BlockSpec(memory_space=pltpu.MemorySpace.VMEM),
            compiler_params=pltpu.CompilerParams(
                vmem_limit_bytes=vmem_limit),
        )(x_flat, w_flat, params)
        return out_flat.reshape(B, C, H, W)

    n_ct = pl.cdiv(C, c_tile)
    ragged = (C % c_tile) != 0

    # Pass 1: channel max/sum reduction + finalize on the last tile.
    # TODO(synk): on v7x, add a leading "parallel" batch axis and move the
    # batch-global conv/BN finalize into a follow-up step so both TensorCores
    # stream the compress pass.
    scale = pl.pallas_call(
        functools.partial(_compress_scale_kernel, channels=C, c_tile=c_tile,
                          height=H, width=W, roll_sign=roll_sign,
                          ragged=ragged),
        out_shape=jax.ShapeDtypeStruct((B, 1, HW), jnp.float32),
        grid=(n_ct,),
        in_specs=[
            pl.BlockSpec((B, c_tile, HW), lambda ct: (0, ct, 0)),
            smem, smem,
        ],
        out_specs=pl.BlockSpec((B, 1, HW), lambda ct: (0, 0, 0)),
        scratch_shapes=[
            pltpu.VMEM((B, HW), jnp.float32),   # running channel max
            pltpu.VMEM((B, HW), jnp.float32),   # running channel sum
        ],
        compiler_params=pltpu.CompilerParams(
            dimension_semantics=("arbitrary",),
            vmem_limit_bytes=vmem_limit),
    )(x_flat, w_flat, params)

    # Pass 2: o = x * scale (streamed in native dtype, megacore parallel).
    out_flat = pl.pallas_call(
        _apply_scale_kernel,
        out_shape=jax.ShapeDtypeStruct((B, C, HW), x.dtype),
        grid=(n_ct,),
        in_specs=[
            pl.BlockSpec((B, c_tile, HW), lambda ct: (0, ct, 0)),
            pl.BlockSpec((B, 1, HW), lambda ct: (0, 0, 0)),
        ],
        out_specs=pl.BlockSpec((B, c_tile, HW), lambda ct: (0, ct, 0)),
        compiler_params=pltpu.CompilerParams(
            dimension_semantics=("parallel",),
            vmem_limit_bytes=vmem_limit),
    )(x_flat, scale)

    return out_flat.reshape(B, C, H, W)


def spatial_attention(x, conv_w, conv_b, bn_gamma, bn_beta, *,
                      c_tile=None, force_two_pass=False):
    B, C, H, W = x.shape
    HW = H * W
    cfg = _hw_config()
    itemsize = jnp.dtype(x.dtype).itemsize

    # Fuse everything into one kernel when x (in + out + f32 temporaries)
    # comfortably fits in VMEM; otherwise stream channel tiles in two passes.
    fused_bytes = B * C * HW * (2 * itemsize + 12) + 4 * B * HW * 4
    fused = (not force_two_pass) and fused_bytes <= cfg["fuse_limit"]

    if fused:
        c_tile = C
    elif c_tile is None:
        c_tile = _pick_c_tile(C, B, HW, x.dtype, cfg["block_budget"],
                              cfg["prefer_multi_tile"])
    else:
        sub = _sublane_multiple(x.dtype)
        if c_tile != C and c_tile % sub != 0:
            raise ValueError(
                f"c_tile={c_tile} must be a multiple of {sub} for dtype "
                f"{x.dtype} (or equal to C={C})")

    return _spatial_attention_impl(
        x, conv_w, conv_b, bn_gamma, bn_beta,
        c_tile=int(c_tile), fused=bool(fused), roll_sign=_roll_sign(),
        vmem_limit=int(cfg["vmem_limit"]))


# ---------------------------------------------------------------------------
# Pure-JAX reference matching the PyTorch forward (BN in training mode).
# ---------------------------------------------------------------------------
def reference(x, conv_w, conv_b, gamma, beta):
    x_max = jnp.max(x, axis=1, keepdims=True)
    x_mean = jnp.mean(x, axis=1, keepdims=True)
    xc = jnp.concatenate([x_max, x_mean], axis=1)
    out = jax.lax.conv_general_dilated(
        xc, conv_w, window_strides=(1, 1),
        padding=((PAD, PAD), (PAD, PAD)),
        dimension_numbers=("NCHW", "OIHW", "NCHW"))
    out = out + conv_b.reshape(1, 1, 1, 1)
    mu = jnp.mean(out)
    var = jnp.mean((out - mu) ** 2)
    y = (out - mu) * (gamma / jnp.sqrt(var + BN_EPS)) + beta
    z = jnp.maximum(y, 0.0)
    return x * jax.nn.sigmoid(z)


if __name__ == "__main__":
    key = jax.random.PRNGKey(0)
    kx, kw, kb, kx2, kx3 = jax.random.split(key, 5)

    # Parameter shapes per nn.Conv2d(2, 1, 7) / nn.BatchNorm2d(1).
    conv_w = 0.05 * jax.random.normal(kw, (1, 2, KSIZE, KSIZE),
                                      dtype=jnp.float32)
    conv_b = 0.1 * jax.random.normal(kb, (1,), dtype=jnp.float32)
    bn_gamma = jnp.float32(1.0)   # PyTorch BatchNorm2d default init
    bn_beta = jnp.float32(0.0)

    def check(out, ref, tol, name):
        if not jnp.allclose(out, ref, atol=tol, rtol=tol):
            err = float(jnp.max(jnp.abs(out.astype(jnp.float32)
                                        - ref.astype(jnp.float32))))
            raise AssertionError(f"{name}: mismatch (max abs err {err:.3e})")

    # 1) Primary small shape -> fused single-kernel path.
    x = jax.random.normal(kx, (2, 4, 16, 16), dtype=jnp.float32)
    out = jax.block_until_ready(
        spatial_attention(x, conv_w, conv_b, bn_gamma, bn_beta))
    check(out, reference(x, conv_w, conv_b, bn_gamma, bn_beta), 1e-4,
          "fused f32")

    # 2) Multi-tile channel reduction (forced two-pass streaming path).
    x2 = jax.random.normal(kx2, (2, 32, 16, 16), dtype=jnp.float32)
    out2 = jax.block_until_ready(
        spatial_attention(x2, conv_w, conv_b, bn_gamma, bn_beta,
                          c_tile=8, force_two_pass=True))
    check(out2, reference(x2, conv_w, conv_b, bn_gamma, bn_beta), 1e-4,
          "two-pass f32")

    # 3) Ragged channel count (C not a multiple of the tile).
    x3 = jax.random.normal(kx3, (2, 20, 16, 16), dtype=jnp.float32)
    out3 = jax.block_until_ready(
        spatial_attention(x3, conv_w, conv_b, bn_gamma, bn_beta,
                          c_tile=8, force_two_pass=True))
    check(out3, reference(x3, conv_w, conv_b, bn_gamma, bn_beta), 1e-4,
          "ragged f32")

    # 4) Native-dtype streaming: bf16 in, bf16 out.
    xb = x2.astype(jnp.bfloat16)
    outb = jax.block_until_ready(
        spatial_attention(xb, conv_w, conv_b, bn_gamma, bn_beta,
                          c_tile=16, force_two_pass=True))
    assert outb.dtype == jnp.bfloat16
    refb = reference(xb.astype(jnp.float32), conv_w, conv_b, bn_gamma, bn_beta)
    check(outb.astype(jnp.float32), refb, 5e-2, "two-pass bf16")

    print("KERNEL_OK")
</pallas_src>

<mosaic_0001>
module attributes {stable_mosaic.version = 11 : i64} {
  func.func @_probe(%arg0: memref<8x128xf32, #tpu.memory_space<vmem>>, %arg1: memref<8x128xf32, #tpu.memory_space<vmem>>) attributes {dimension_semantics = [], scalar_prefetch = 0 : i64, scratch_operands = 0 : i64, tpu.core_type = #tpu.core_type<tc>} {
    %c0 = arith.constant 0 : index
    %c0_0 = arith.constant 0 : index
    %0 = vector.load %arg0[%c0, %c0_0] : memref<8x128xf32, #tpu.memory_space<vmem>>, vector<8x128xf32>
    %c1_i32 = arith.constant 1 : i32
    %1 = tpu.dynamic_rotate %0 by %c1_i32 dim 1 : vector<8x128xf32>, i32 -> vector<8x128xf32>
    %c0_1 = arith.constant 0 : index
    %c0_2 = arith.constant 0 : index
    %2 = vector.load %arg1[%c0_1, %c0_2] : memref<8x128xf32, #tpu.memory_space<vmem>>, vector<8x128xf32>
    tpu.vector_store %arg1[%c0_1, %c0_2], %1 {strides = array<i32>} : memref<8x128xf32, #tpu.memory_space<vmem>>, vector<8x128xf32>,
    return
  }
}

</mosaic_0001>

<llo_original>
// kernel: tpu_custom_call.1
$region0: #{tpu_custom_call.1}
  #allocation0 [shape = 'u32[]', space=smem, size = 0x4, offset = 0x4, fixed_abs, tag = 'smem constant byte address 0x4 - core index']
  #allocation1 [shape = 'u32[144,128]{1,0:T(1,128)}', space=vmem, size = 0x12000, scoped, tag = 'internal scratch']
  %s0 = inlined_call_operand.hbm [shape: f32[8,128], index: 0, kind: input, shape index: {}]
  %s1 = inlined_call_operand.hbm [shape: f32[8,128], index: 1, kind: output, shape index: {}]
  %s2 = sld [smem:[#allocation0]]
  $region18: #{tpu_custom_call.1} parent=0
    _
  %s4 = ssub.s32 1, %s2
  %s5 = scalar_select 0, %s4, %s2
  $region1: #{tpu_custom_call.1} parent=0
    #allocation2 [shape = 'u8[4096]{0}', space=vmem, size = 0x1000, scoped, tag = 'input window, operand 0, single buffered']
    #allocation3 [shape = 's32[1]{0}', space=sflag, size = 0x4, scoped, tag = 'scoped memory for tpu_custom_call.1']
    #allocation4 [shape = 's32[1]{0}', space=sflag, size = 0x4, scoped, tag = 'scoped memory for tpu_custom_call.1']
    #allocation5 [shape = 'u8[4096]{0}', space=vmem, size = 0x1000, scoped, tag = 'output window, operand 0, single buffered']
    %6 = vsyncpa [#allocation3], 0
    %7 = vsyncpa [#allocation4], 0
    // Predicated region
    $region2: #{tpu_custom_call.1} parent=1 // pred_check
      _
    $region3: #{tpu_custom_call.1} parent=1 // pred_check_branch
      %9 = sbr.rel (0) target = $region5
    $region4: #{tpu_custom_call.1} parent=1 // pred_region
      %s11 = ssub.s32 128, 128
      %12 = vsyncadd [#allocation3], %s11
      %s14 = sshll.u32 [#allocation2], 4
      %s15 = int_to_ptr.vmem [resolvable:$true] %s14
      %17 = dma.hbm_to_vmem [thread:$0]  %s0, 128, %s15, [#allocation3]
    $region5: #{tpu_custom_call.1} parent=1 // pred_fallthru
      _
    // Predicated region
    $region6: #{tpu_custom_call.1} parent=1 // pred_check
      _
    $region7: #{tpu_custom_call.1} parent=1 // pred_check_branch
      %19 = sbr.rel (0) target = $region9
    $region8: #{tpu_custom_call.1} parent=1 // pred_region
      %20 = dma.done [#allocation3], 128
    $region9: #{tpu_custom_call.1} parent=1 // pred_fallthru
      _
    %v21 = vld [vmem:[#allocation2] sm:$0xff]
    %22 = vrot.lane.b32.xlu0 %v21, 1
    %v23 = vpop.permute.xlu0 %22
    %24 = vst [vmem:[#allocation5] sm:$0xff] %v23
    // Predicated region
    $region10: #{tpu_custom_call.1} parent=1 // pred_check
      _
    $region11: #{tpu_custom_call.1} parent=1 // pred_check_branch
      %26 = sbr.rel (0) target = $region13
    $region12: #{tpu_custom_call.1} parent=1 // pred_region
      %s28 = ssub.s32 128, 128
      %29 = vsyncadd [#allocation4], %s28
      %s31 = sshll.u32 [#allocation5], 4
      %s32 = int_to_ptr.vmem [resolvable:$true] %s31
      %34 = dma.vmem_to_hbm [thread:$0]  %s32, 128, %s1, [#allocation4]
    $region13: #{tpu_custom_call.1} parent=1 // pred_fallthru
      _
    // Predicated region
    $region14: #{tpu_custom_call.1} parent=1 // pred_check
      _
    $region15: #{tpu_custom_call.1} parent=1 // pred_check_branch
      %36 = sbr.rel (0) target = $region17
    $region16: #{tpu_custom_call.1} parent=1 // pred_region
      %37 = dma.done [#allocation4], 128
    $region17: #{tpu_custom_call.1} parent=1 // pred_fallthru
      _
    %38 = vsyncpa [#allocation3], 1
    %39 = vsyncpa [#allocation4], 1

</llo_original>
